<compile_context>
chip_gen: v7x
topology: tpu7x:2x2x1
jax: 0.10.0
libtpu: 0.0.40
codegen_flags: <defaults>
</compile_context>

<pallas_src>
import math
from functools import partial

import jax
import jax.numpy as jnp
from jax import lax
from jax.experimental import pallas as pl
from jax.experimental.pallas import tpu as pltpu


def _self_attention_kernel(x_ref, wq_ref, wk_ref, wv_ref,
                           bq_ref, bk_ref, bv_ref,
                           wp_ref, bp_ref, o_ref, *, seq_len: int):
    """One grid step = `Bb` whole batch elements, presented as a flat
    (Bb*T, E) bf16 token slab."""
    rows, E = x_ref.shape                     # rows = Bb * T
    T = seq_len
    Bb = rows // T

    x = x_ref[...]                            # bf16 MXU operand, (Bb*T, E)

    # ---- Q/K/V projections: three MXU matmuls over the whole token slab,
    # f32 accumulation.  The 1/sqrt(E) scale is pre-folded into wq/bq.
    q = jnp.dot(x, wq_ref[...], preferred_element_type=jnp.float32) + bq_ref[...]
    k = jnp.dot(x, wk_ref[...], preferred_element_type=jnp.float32) + bk_ref[...]
    v = jnp.dot(x, wv_ref[...], preferred_element_type=jnp.float32) + bv_ref[...]

    # Leading-dim split only (last dim untouched) -> no lane relayout.
    q = q.reshape(Bb, T, E)
    k = k.reshape(Bb, T, E)
    v = v.reshape(Bb, T, E)

    # ---- scaled dot-product attention (single head, non-causal).
    # Contraction on the last dims: no transposed copy of k (XLU stays free).
    s = lax.dot_general(
        q.astype(jnp.bfloat16), k.astype(jnp.bfloat16),
        dimension_numbers=(((2,), (2,)), ((0,), (0,))),
        preferred_element_type=jnp.float32)                    # (Bb, T, T) f32

    m = jnp.max(s, axis=-1, keepdims=True)                     # f32 stats (v5e-safe)
    p = jnp.exp(s - m)
    l = jnp.sum(p, axis=-1, keepdims=True)

    # Unnormalized p @ v with bf16 operands; normalize afterwards (O(T*E)).
    a = lax.dot_general(
        p.astype(jnp.bfloat16), v.astype(jnp.bfloat16),
        dimension_numbers=(((2,), (1,)), ((0,), (0,))),
        preferred_element_type=jnp.float32)                    # (Bb, T, E) f32
    a = a * pl.reciprocal(l, approx=True)                      # EUP slot, not a VPU divide

    # ---- output projection (c_proj) over the flat token slab.
    a_flat = a.reshape(rows, E).astype(jnp.bfloat16)
    out = jnp.dot(a_flat, wp_ref[...],
                  preferred_element_type=jnp.float32) + bp_ref[...]
    o_ref[...] = out.astype(o_ref.dtype)                       # bf16 store


def self_attention(x, wq, wk, wv, bq, bk, bv, wp, bp):
    """x: (B, T, E) bf16.  wq/wk/wv/wp: (E, E) bf16 (softmax scale folded into wq).
       bq/bk/bv/bp: (1, E) f32 (scale folded into bq).  Returns (B, T, E) bf16."""
    B, T, E = x.shape

    def vmem_estimate(bb):
        rows = bb * T
        slabs = 2 * (rows * E * 2) * 2                  # x + out slabs, bf16, double-buffered
        weights = 2 * (4 * E * E * 2 + 4 * E * 4)       # 4 bf16 weights + 4 f32 biases, double-buffered
        live = (3 * rows * E + 2 * bb * T * T + 2 * rows * E) * 4   # q/k/v, s/p, a/out (f32)
        return slabs + weights + live

    # Batches per grid step: largest bb such that
    #   * B % bb == 0 and grid = B // bb >= 2 (shard across v7x's 2 TCs, keep
    #     >= 2 pipeline steps so input prefetch overlaps compute),
    #   * rows = bb*T respects the (8,128) sublane rule,
    #   * at most a few hundred flattened rows (step-overhead amortization),
    #   * the f32 score/prob intermediates + double-buffered slabs fit a 32 MiB
    #     VMEM budget (safe on v7x's 64 MiB physical VMEM).
    vmem_budget = 32 * 1024 * 1024
    min_grid = 2 if B >= 2 else 1
    bb = 1
    for cand in range(1, B + 1):
        if B % cand != 0 or (B // cand) < min_grid:
            continue
        rows_c = cand * T
        if rows_c % 8 != 0 and rows_c != B * T:
            continue
        if rows_c > 512:
            continue
        if vmem_estimate(cand) > vmem_budget:
            continue
        bb = cand
    if (bb * T) % 8 != 0 and bb != B:
        bb = B          # full-slab fallback (block == full array is always legal)
    rows = bb * T
    grid = (B // bb,)
    vmem_limit = int(min(64 * 1024 * 1024,
                         max(2 * vmem_estimate(bb), 32 * 1024 * 1024)))

    # Flatten tokens in the wrapper (free layout plumbing in XLA); the kernel
    # works on 2D (rows, E) slabs for the projections.
    x_flat = x.reshape(B * T, E)

    const = lambda i: (0, 0)
    out_flat = pl.pallas_call(
        partial(_self_attention_kernel, seq_len=T),
        out_shape=jax.ShapeDtypeStruct((B * T, E), jnp.bfloat16),
        grid_spec=pltpu.PrefetchScalarGridSpec(
            num_scalar_prefetch=0,
            grid=grid,
            in_specs=[
                pl.BlockSpec((rows, E), lambda i: (i, 0)),   # bf16 token slab
                pl.BlockSpec((E, E), const),                 # wq (bf16, scale folded)
                pl.BlockSpec((E, E), const),                 # wk (bf16)
                pl.BlockSpec((E, E), const),                 # wv (bf16)
                pl.BlockSpec((1, E), const),                 # bq (f32, scale folded)
                pl.BlockSpec((1, E), const),                 # bk (f32)
                pl.BlockSpec((1, E), const),                 # bv (f32)
                pl.BlockSpec((E, E), const),                 # wp (bf16)
                pl.BlockSpec((1, E), const),                 # bp (f32)
                # TODO(synk): at realistic E (e.g. 1024) mark these grid-invariant
                # weight specs pipeline_mode=pl.Buffered(1) (or tile the weight
                # output dim) so they are not double-buffered out of v7x VMEM.
            ],
            out_specs=pl.BlockSpec((rows, E), lambda i: (i, 0)),
        ),
        compiler_params=pltpu.CompilerParams(
            dimension_semantics=("parallel",),
            vmem_limit_bytes=vmem_limit),
    )(x_flat, wq, wk, wv, bq, bk, bv, wp, bp)
    return out_flat.reshape(B, T, E)


def _torch_linear_init(key, out_features, in_features):
    """Deterministic init mimicking torch.nn.Linear defaults."""
    bound = 1.0 / math.sqrt(in_features)
    kw, kb = jax.random.split(key)
    w = jax.random.uniform(kw, (out_features, in_features),
                           minval=-bound, maxval=bound, dtype=jnp.float32)
    b = jax.random.uniform(kb, (out_features,),
                           minval=-bound, maxval=bound, dtype=jnp.float32)
    return w, b


def _reference(x, w_qkv, b_qkv, w_proj, b_proj):
    """Pure-JAX f32 reference of the same forward pass."""
    E = x.shape[-1]
    qkv = x @ w_qkv + b_qkv
    q, k, v = qkv[..., :E], qkv[..., E:2 * E], qkv[..., 2 * E:]
    s = jnp.einsum("btd,bsd->bts", q, k) / math.sqrt(E)
    p = jax.nn.softmax(s, axis=-1)
    a = jnp.einsum("bts,bsd->btd", p, v)
    return a @ w_proj + b_proj


if __name__ == "__main__":
    B, T, E = 2, 8, 32
    key = jax.random.PRNGKey(0)
    k_x, k_attn, k_proj = jax.random.split(key, 3)

    x = jax.random.normal(k_x, (B, T, E), dtype=jnp.float32)

    # c_attn: Linear(E, 3E); c_proj: Linear(E, E)   (torch (out, in) layout)
    w_attn, b_attn = _torch_linear_init(k_attn, 3 * E, E)   # (3E, E), (3E,)
    w_proj, b_proj = _torch_linear_init(k_proj, E, E)       # (E, E),  (E,)

    # One-time host-side parameter prep for the kernel:
    #   * transpose to (in, out),
    #   * split the fused c_attn weight into Wq/Wk/Wv (avoids in-kernel lane
    #     slicing at E=32),
    #   * fold the 1/sqrt(E) softmax scale into Wq and bq,
    #   * cast weights to bf16 (MXU operands); biases stay f32.
    scale = 1.0 / math.sqrt(E)
    w_qkv_f32 = w_attn.T                                     # (E, 3E)
    wq = (w_qkv_f32[:, 0 * E:1 * E] * scale).astype(jnp.bfloat16)
    wk = w_qkv_f32[:, 1 * E:2 * E].astype(jnp.bfloat16)
    wv = w_qkv_f32[:, 2 * E:3 * E].astype(jnp.bfloat16)
    bq = (b_attn[0 * E:1 * E] * scale).reshape(1, E)         # f32
    bk = b_attn[1 * E:2 * E].reshape(1, E)
    bv = b_attn[2 * E:3 * E].reshape(1, E)
    wp = w_proj.T.astype(jnp.bfloat16)                       # (E, E)
    bp = b_proj.reshape(1, E)

    # bf16 I/O: the kernel is HBM-bound; halving input/output bytes is the
    # biggest wall-clock lever at these shapes.
    x_bf16 = x.astype(jnp.bfloat16)

    out = self_attention(x_bf16, wq, wk, wv, bq, bk, bv, wp, bp)
    out = jax.block_until_ready(out)

    ref = _reference(x, w_qkv_f32, b_attn.reshape(1, 3 * E), w_proj.T,
                     b_proj.reshape(1, E))
    # Tolerance reflects bf16 input/weights/output plus the approximate EUP
    # reciprocal on the softmax denominator (use approx=False / f32 I/O if
    # tighter agreement with the PyTorch module is required).
    assert jnp.allclose(out.astype(jnp.float32), ref, atol=5e-2, rtol=5e-2), \
        "mismatch vs reference"

    print("KERNEL_OK")
</pallas_src>

<mosaic_0001>
module attributes {stable_mosaic.version = 11 : i64} {
  func.func @_self_attention_kernel(%arg0: i32, %arg1: memref<8x32xbf16, #tpu.memory_space<vmem>>, %arg2: memref<32x32xbf16, #tpu.memory_space<vmem>>, %arg3: memref<32x32xbf16, #tpu.memory_space<vmem>>, %arg4: memref<32x32xbf16, #tpu.memory_space<vmem>>, %arg5: memref<1x32xf32, #tpu.memory_space<vmem>>, %arg6: memref<1x32xf32, #tpu.memory_space<vmem>>, %arg7: memref<1x32xf32, #tpu.memory_space<vmem>>, %arg8: memref<32x32xbf16, #tpu.memory_space<vmem>>, %arg9: memref<1x32xf32, #tpu.memory_space<vmem>>, %arg10: memref<8x32xbf16, #tpu.memory_space<vmem>>) attributes {dimension_semantics = [#tpu.dimension_semantics<parallel>], iteration_bounds = array<i64: 2>, scalar_prefetch = 0 : i64, scratch_operands = 0 : i64, tpu.core_type = #tpu.core_type<tc>, window_params = [{transform_indices = @transform_0, window_bounds = array<i64: 8, 32>}, {pipeline_mode = #tpu.pipeline_mode<synchronous>, transform_indices = @transform_1, window_bounds = array<i64: 32, 32>}, {pipeline_mode = #tpu.pipeline_mode<synchronous>, transform_indices = @transform_2, window_bounds = array<i64: 32, 32>}, {pipeline_mode = #tpu.pipeline_mode<synchronous>, transform_indices = @transform_3, window_bounds = array<i64: 32, 32>}, {pipeline_mode = #tpu.pipeline_mode<synchronous>, transform_indices = @transform_4, window_bounds = array<i64: 1, 32>}, {pipeline_mode = #tpu.pipeline_mode<synchronous>, transform_indices = @transform_5, window_bounds = array<i64: 1, 32>}, {pipeline_mode = #tpu.pipeline_mode<synchronous>, transform_indices = @transform_6, window_bounds = array<i64: 1, 32>}, {pipeline_mode = #tpu.pipeline_mode<synchronous>, transform_indices = @transform_7, window_bounds = array<i64: 32, 32>}, {pipeline_mode = #tpu.pipeline_mode<synchronous>, transform_indices = @transform_8, window_bounds = array<i64: 1, 32>}, {transform_indices = @transform_9, window_bounds = array<i64: 8, 32>}]} {
    %c0 = arith.constant 0 : index
    %c0_0 = arith.constant 0 : index
    %0 = vector.load %arg1[%c0, %c0_0] : memref<8x32xbf16, #tpu.memory_space<vmem>>, vector<8x32xbf16>
    %c0_1 = arith.constant 0 : index
    %c0_2 = arith.constant 0 : index
    %1 = vector.load %arg2[%c0_1, %c0_2] : memref<32x32xbf16, #tpu.memory_space<vmem>>, vector<32x32xbf16>
    %cst = arith.constant dense<0.000000e+00> : vector<8x32xf32>
    %2 = tpu.matmul %0, %1, %cst {dimension_numbers = #tpu.dot_dimension_numbers<[1], [0], [0], [1], [0, 0, 1, 1], [], []>} : vector<8x32xbf16>, vector<32x32xbf16>, vector<8x32xf32> -> vector<8x32xf32>
    %c0_3 = arith.constant 0 : index
    %c0_4 = arith.constant 0 : index
    %3 = vector.load %arg5[%c0_3, %c0_4] : memref<1x32xf32, #tpu.memory_space<vmem>>, vector<1x32xf32>
    %4 = vector.broadcast %3 : vector<1x32xf32> to vector<8x32xf32>
    %5 = arith.addf %2, %4 : vector<8x32xf32>
    %c0_5 = arith.constant 0 : index
    %c0_6 = arith.constant 0 : index
    %6 = vector.load %arg3[%c0_5, %c0_6] : memref<32x32xbf16, #tpu.memory_space<vmem>>, vector<32x32xbf16>
    %cst_7 = arith.constant dense<0.000000e+00> : vector<8x32xf32>
    %7 = tpu.matmul %0, %6, %cst_7 {dimension_numbers = #tpu.dot_dimension_numbers<[1], [0], [0], [1], [0, 0, 1, 1], [], []>} : vector<8x32xbf16>, vector<32x32xbf16>, vector<8x32xf32> -> vector<8x32xf32>
    %c0_8 = arith.constant 0 : index
    %c0_9 = arith.constant 0 : index
    %8 = vector.load %arg6[%c0_8, %c0_9] : memref<1x32xf32, #tpu.memory_space<vmem>>, vector<1x32xf32>
    %9 = vector.broadcast %8 : vector<1x32xf32> to vector<8x32xf32>
    %10 = arith.addf %7, %9 : vector<8x32xf32>
    %c0_10 = arith.constant 0 : index
    %c0_11 = arith.constant 0 : index
    %11 = vector.load %arg4[%c0_10, %c0_11] : memref<32x32xbf16, #tpu.memory_space<vmem>>, vector<32x32xbf16>
    %cst_12 = arith.constant dense<0.000000e+00> : vector<8x32xf32>
    %12 = tpu.matmul %0, %11, %cst_12 {dimension_numbers = #tpu.dot_dimension_numbers<[1], [0], [0], [1], [0, 0, 1, 1], [], []>} : vector<8x32xbf16>, vector<32x32xbf16>, vector<8x32xf32> -> vector<8x32xf32>
    %c0_13 = arith.constant 0 : index
    %c0_14 = arith.constant 0 : index
    %13 = vector.load %arg7[%c0_13, %c0_14] : memref<1x32xf32, #tpu.memory_space<vmem>>, vector<1x32xf32>
    %14 = vector.broadcast %13 : vector<1x32xf32> to vector<8x32xf32>
    %15 = arith.addf %12, %14 : vector<8x32xf32>
    %16 = vector.shape_cast %5 : vector<8x32xf32> to vector<1x8x32xf32>
    %17 = vector.shape_cast %10 : vector<8x32xf32> to vector<1x8x32xf32>
    %18 = vector.shape_cast %15 : vector<8x32xf32> to vector<1x8x32xf32>
    %19 = arith.truncf %16 : vector<1x8x32xf32> to vector<1x8x32xbf16>
    %20 = arith.truncf %17 : vector<1x8x32xf32> to vector<1x8x32xbf16>
    %cst_15 = arith.constant dense<0.000000e+00> : vector<1x8x8xf32>
    %21 = tpu.matmul %19, %20, %cst_15 {dimension_numbers = #tpu.dot_dimension_numbers<[2], [2], [1], [1], [0, 0, 0, 1, 1, 1], [0], [0]>} : vector<1x8x32xbf16>, vector<1x8x32xbf16>, vector<1x8x8xf32> -> vector<1x8x8xf32>
    %cst_16 = arith.constant dense<0xFF800000> : vector<1x8xf32>
    %22 = vector.multi_reduction <maximumf>, %21, %cst_16 [2] : vector<1x8x8xf32> to vector<1x8xf32>
    %23 = vector.shape_cast %22 : vector<1x8xf32> to vector<1x8x1xf32>
    %24 = vector.broadcast %23 : vector<1x8x1xf32> to vector<1x8x8xf32>
    %25 = arith.subf %21, %24 : vector<1x8x8xf32>
    %26 = math.exp %25 : vector<1x8x8xf32>
    %cst_17 = arith.constant dense<0.000000e+00> : vector<1x8xf32>
    %27 = vector.multi_reduction <add>, %26, %cst_17 [2] : vector<1x8x8xf32> to vector<1x8xf32>
    %28 = vector.shape_cast %27 : vector<1x8xf32> to vector<1x8x1xf32>
    %29 = arith.truncf %26 : vector<1x8x8xf32> to vector<1x8x8xbf16>
    %30 = arith.truncf %18 : vector<1x8x32xf32> to vector<1x8x32xbf16>
    %cst_18 = arith.constant dense<0.000000e+00> : vector<1x8x32xf32>
    %31 = tpu.matmul %29, %30, %cst_18 {dimension_numbers = #tpu.dot_dimension_numbers<[2], [1], [1], [2], [0, 0, 0, 1, 1, 2], [0], [0]>} : vector<1x8x8xbf16>, vector<1x8x32xbf16>, vector<1x8x32xf32> -> vector<1x8x32xf32>
    %32 = tpu.reciprocal %28 {approx = true} : vector<1x8x1xf32> -> vector<1x8x1xf32>
    %33 = vector.broadcast %32 : vector<1x8x1xf32> to vector<1x8x32xf32>
    %34 = arith.mulf %31, %33 : vector<1x8x32xf32>
    %35 = vector.shape_cast %34 : vector<1x8x32xf32> to vector<8x32xf32>
    %36 = arith.truncf %35 : vector<8x32xf32> to vector<8x32xbf16>
    %c0_19 = arith.constant 0 : index
    %c0_20 = arith.constant 0 : index
    %37 = vector.load %arg8[%c0_19, %c0_20] : memref<32x32xbf16, #tpu.memory_space<vmem>>, vector<32x32xbf16>
    %cst_21 = arith.constant dense<0.000000e+00> : vector<8x32xf32>
    %38 = tpu.matmul %36, %37, %cst_21 {dimension_numbers = #tpu.dot_dimension_numbers<[1], [0], [0], [1], [0, 0, 1, 1], [], []>} : vector<8x32xbf16>, vector<32x32xbf16>, vector<8x32xf32> -> vector<8x32xf32>
    %c0_22 = arith.constant 0 : index
    %c0_23 = arith.constant 0 : index
    %39 = vector.load %arg9[%c0_22, %c0_23] : memref<1x32xf32, #tpu.memory_space<vmem>>, vector<1x32xf32>
    %40 = vector.broadcast %39 : vector<1x32xf32> to vector<8x32xf32>
    %41 = arith.addf %38, %40 : vector<8x32xf32>
    %42 = arith.truncf %41 : vector<8x32xf32> to vector<8x32xbf16>
    %c0_24 = arith.constant 0 : index
    %c0_25 = arith.constant 0 : index
    %43 = vector.load %arg10[%c0_24, %c0_25] : memref<8x32xbf16, #tpu.memory_space<vmem>>, vector<8x32xbf16>
    tpu.vector_store %arg10[%c0_24, %c0_25], %42 {strides = array<i32>} : memref<8x32xbf16, #tpu.memory_space<vmem>>, vector<8x32xbf16>,
    return
  }
  func.func @transform_0(%arg0: i32) -> (i32, i32) {
    %c0_i32 = arith.constant 0 : i32
    %c0_i32_0 = arith.constant 0 : i32
    return %arg0, %c0_i32 : i32, i32
  }
  func.func @transform_1(%arg0: i32) -> (i32, i32) {
    %c0_i32 = arith.constant 0 : i32
    %c0_i32_0 = arith.constant 0 : i32
    %c0_i32_1 = arith.constant 0 : i32
    return %c0_i32, %c0_i32_0 : i32, i32
  }
  func.func @transform_2(%arg0: i32) -> (i32, i32) {
    %c0_i32 = arith.constant 0 : i32
    %c0_i32_0 = arith.constant 0 : i32
    %c0_i32_1 = arith.constant 0 : i32
    return %c0_i32, %c0_i32_0 : i32, i32
  }
  func.func @transform_3(%arg0: i32) -> (i32, i32) {
    %c0_i32 = arith.constant 0 : i32
    %c0_i32_0 = arith.constant 0 : i32
    %c0_i32_1 = arith.constant 0 : i32
    return %c0_i32, %c0_i32_0 : i32, i32
  }
  func.func @transform_4(%arg0: i32) -> (i32, i32) {
    %c0_i32 = arith.constant 0 : i32
    %c0_i32_0 = arith.constant 0 : i32
    %c0_i32_1 = arith.constant 0 : i32
    return %c0_i32, %c0_i32_0 : i32, i32
  }
  func.func @transform_5(%arg0: i32) -> (i32, i32) {
    %c0_i32 = arith.constant 0 : i32
    %c0_i32_0 = arith.constant 0 : i32
    %c0_i32_1 = arith.constant 0 : i32
    return %c0_i32, %c0_i32_0 : i32, i32
  }
  func.func @transform_6(%arg0: i32) -> (i32, i32) {
    %c0_i32 = arith.constant 0 : i32
    %c0_i32_0 = arith.constant 0 : i32
    %c0_i32_1 = arith.constant 0 : i32
    return %c0_i32, %c0_i32_0 : i32, i32
  }
  func.func @transform_7(%arg0: i32) -> (i32, i32) {
    %c0_i32 = arith.constant 0 : i32
    %c0_i32_0 = arith.constant 0 : i32
    %c0_i32_1 = arith.constant 0 : i32
    return %c0_i32, %c0_i32_0 : i32, i32
  }
  func.func @transform_8(%arg0: i32) -> (i32, i32) {
    %c0_i32 = arith.constant 0 : i32
    %c0_i32_0 = arith.constant 0 : i32
    %c0_i32_1 = arith.constant 0 : i32
    return %c0_i32, %c0_i32_0 : i32, i32
  }
  func.func @transform_9(%arg0: i32) -> (i32, i32) {
    %c0_i32 = arith.constant 0 : i32
    %c0_i32_0 = arith.constant 0 : i32
    return %arg0, %c0_i32 : i32, i32
  }
}

</mosaic_0001>

<llo_original>
// kernel: tpu_custom_call.1
$region0: #{tpu_custom_call.1}
  #allocation0 [shape = 'u32[]', space=smem, size = 0x4, offset = 0x4, fixed_abs, tag = 'smem constant byte address 0x4 - core index']
  #allocation1 [shape = 'u32[144,128]{1,0:T(1,128)}', space=vmem, size = 0x12000, scoped, tag = 'internal scratch']
  %s0 = inlined_call_operand.hbm [shape: bf16[16,32], index: 0, kind: input, shape index: {}]
  %s1 = inlined_call_operand.hbm [shape: bf16[32,32], index: 1, kind: input, shape index: {}]
  %s2 = inlined_call_operand.hbm [shape: bf16[32,32], index: 2, kind: input, shape index: {}]
  %s3 = inlined_call_operand.hbm [shape: bf16[32,32], index: 3, kind: input, shape index: {}]
  %s4 = inlined_call_operand.vmem [shape: f32[1,32], index: 4, kind: input, shape index: {}]
  %s5 = inlined_call_operand.vmem [shape: f32[1,32], index: 5, kind: input, shape index: {}]
  %s6 = inlined_call_operand.vmem [shape: f32[1,32], index: 6, kind: input, shape index: {}]
  %s7 = inlined_call_operand.vmem [shape: bf16[32,32], index: 7, kind: input, shape index: {}]
  %s8 = inlined_call_operand.vmem [shape: f32[1,32], index: 8, kind: input, shape index: {}]
  %s9 = inlined_call_operand.hbm [shape: bf16[16,32], index: 9, kind: output, shape index: {}]
  %s10 = sld [smem:[#allocation0]]
  $region85: #{tpu_custom_call.1} parent=0
    _
  %s12 = ssub.s32 1, %s10
  %s13 = scalar_select 0, %s12, %s10
  $region1: #{tpu_custom_call.1} parent=0
    #allocation2 [shape = 'u8[4096]{0}', space=vmem, size = 0x1000, scoped, tag = 'input window, operand 0']
    #allocation3 [shape = 's32[2]{0}', space=sflag, size = 0x8, scoped, tag = 'scoped memory for tpu_custom_call.1']
    #allocation4 [shape = 's32[2]{0}', space=sflag, size = 0x8, scoped, tag = 'scoped memory for tpu_custom_call.1']
    #allocation5 [shape = 'u8[8192]{0}', space=vmem, size = 0x2000, scoped, tag = 'input window, operand 1, single buffered']
    #allocation6 [shape = 's32[1]{0}', space=sflag, size = 0x4, scoped, tag = 'scoped memory for tpu_custom_call.1']
    #allocation7 [shape = 'u8[8192]{0}', space=vmem, size = 0x2000, scoped, tag = 'input window, operand 2, single buffered']
    #allocation8 [shape = 'u8[8192]{0}', space=vmem, size = 0x2000, scoped, tag = 'input window, operand 3, single buffered']
    #allocation9 [shape = 's32[1]{0}', space=sflag, size = 0x4, scoped, tag = 'scoped memory for tpu_custom_call.1']
    #allocation10 [shape = 'u8[4096]{0}', space=vmem, size = 0x1000, scoped, tag = 'output window, operand 0']
    %14 = vsyncpa [#allocation3], 0
    %s15 = scalar_lea.sflag [#allocation3], 1
    %16 = vsyncpa %s15, 0
    %17 = vsyncpa [#allocation6], 0
    %18 = vsyncpa [#allocation9], 0
    %19 = vsyncpa [#allocation4], 0
    %s20 = scalar_lea.sflag [#allocation4], 1
    %21 = vsyncpa %s20, 0
    loop: start=0, step=1, limit=4
    $region2: #{tpu_custom_call.1} parent=1 // loop_pre_header
      _
    $region3: #{tpu_custom_call.1} parent=1 // loop_header
      %s23 = sphi 0, %s27
      %p24 = scmp.ge.s32.totalorder %s23, 4
      %s33 = sphi 0, %s35
      %s36 = sphi 0, %s33
      %s37 = sphi 0, %s36
      %s53 = sphi 0, %s37
      %s57 = sphi 0, %s57
      %s59 = sphi 0, %s57
      %s60 = sphi 0, %s59
      %s74 = sphi 0, %s60
      %s78 = sphi 0, %s78
      %s80 = sphi 0, %s78
      %s81 = sphi 0, %s80
      %s95 = sphi 0, %s81
      %s99 = sphi 0, %s99
      %s101 = sphi 0, %s99
      %s102 = sphi 0, %s101
      %s116 = sphi 0, %s102
      %s120 = sphi 0, %s120
      %s122 = sphi 0, %s120
      %s123 = sphi 0, %s122
      %s137 = sphi 0, %s123
      %s141 = sphi 0, %s141
      %s143 = sphi 0, %s141
      %s144 = sphi 0, %s143
      %s158 = sphi 0, %s144
      %s162 = sphi 0, %s162
      %s164 = sphi 0, %s162
      %s165 = sphi 0, %s164
      %s179 = sphi 0, %s165
      %s183 = sphi 0, %s183
      %s185 = sphi 0, %s183
      %s186 = sphi 0, %s185
      %s200 = sphi 0, %s186
      %s204 = sphi 0, %s204
      %s206 = sphi 0, %s204
      %s207 = sphi 0, %s206
      %s221 = sphi 0, %s207
      %s227 = sphi 0, %s229
      %s230 = sphi 0, %s227
      %s231 = sphi 0, %s230
      %s247 = sphi 0, %s231
    $region4: #{tpu_custom_call.1} parent=1 // loop_header_branch
      %26 = sbr.rel (%p24) target = $region8
    $region5: #{tpu_custom_call.1} parent=1 // loop_body
      %s28 = ssub.s32 %s23, 1
      %s29 = ssub.s32 %s23, 2
      %s30 = sadd.s32 %s23, 1
      %s31 = ssub.s32 %s23, %s30
      %p32 = scmp.eq.s32.totalorder %s31, 0
      %s34 = sadd.s32 %s33, 1
      %s35 = scalar_select %p32, %s33, %s34
      %p38 = pneg %p32
      %p39 = scmp.eq.s32.totalorder %s23, 1
      %p40 = por %p38, %p39
      %p41 = scmp.ne.s32.totalorder %s33, %s36
      %p42 = scmp.eq.s32.totalorder %s23, 0
      %p43 = por %p41, %p42
      %p44 = scmp.ne.s32.totalorder %s33, %s36
      %p45 = scmp.eq.s32.totalorder %s28, 1
      %p46 = por %p44, %p45
      %p47 = scmp.ne.s32.totalorder %s36, %s37
      %p48 = scmp.eq.s32.totalorder %s28, 0
      %p49 = por %p47, %p48
      %p50 = scmp.ne.s32.totalorder %s36, %s37
      %p51 = scmp.eq.s32.totalorder %s29, 1
      %p52 = por %p50, %p51
      %p54 = scmp.ne.s32.totalorder %s37, %s53
      %p55 = scmp.eq.s32.totalorder %s29, 0
      %p56 = por %p54, %p55
      %s58 = sadd.s32 %s57, 1
      %p61 = scmp.eq.s32.totalorder %s23, 1
      %p62 = scmp.ne.s32.totalorder %s57, %s59
      %p63 = scmp.eq.s32.totalorder %s23, 0
      %p64 = por %p62, %p63
      %p65 = scmp.ne.s32.totalorder %s57, %s59
      %p66 = scmp.eq.s32.totalorder %s28, 1
      %p67 = por %p65, %p66
      %p68 = scmp.ne.s32.totalorder %s59, %s60
      %p69 = scmp.eq.s32.totalorder %s28, 0
      %p70 = por %p68, %p69
      %p71 = scmp.ne.s32.totalorder %s59, %s60
      %p72 = scmp.eq.s32.totalorder %s29, 1
      %p73 = por %p71, %p72
      %p75 = scmp.ne.s32.totalorder %s60, %s74
      %p76 = scmp.eq.s32.totalorder %s29, 0
      %p77 = por %p75, %p76
      %s79 = sadd.s32 %s78, 1
      %p82 = scmp.eq.s32.totalorder %s23, 1
      %p83 = scmp.ne.s32.totalorder %s78, %s80
      %p84 = scmp.eq.s32.totalorder %s23, 0
      %p85 = por %p83, %p84
      %p86 = scmp.ne.s32.totalorder %s78, %s80
      %p87 = scmp.eq.s32.totalorder %s28, 1
      %p88 = por %p86, %p87
      %p89 = scmp.ne.s32.totalorder %s80, %s81
      %p90 = scmp.eq.s32.totalorder %s28, 0
      %p91 = por %p89, %p90
      %p92 = scmp.ne.s32.totalorder %s80, %s81
      %p93 = scmp.eq.s32.totalorder %s29, 1
      %p94 = por %p92, %p93
      %p96 = scmp.ne.s32.totalorder %s81, %s95
      %p97 = scmp.eq.s32.totalorder %s29, 0
      %p98 = por %p96, %p97
      %s100 = sadd.s32 %s99, 1
      %p103 = scmp.eq.s32.totalorder %s23, 1
      %p104 = scmp.ne.s32.totalorder %s99, %s101
      %p105 = scmp.eq.s32.totalorder %s23, 0
      %p106 = por %p104, %p105
      %p107 = scmp.ne.s32.totalorder %s99, %s101
      %p108 = scmp.eq.s32.totalorder %s28, 1
      %p109 = por %p107, %p108
      %p110 = scmp.ne.s32.totalorder %s101, %s102
      %p111 = scmp.eq.s32.totalorder %s28, 0
      %p112 = por %p110, %p111
      %p113 = scmp.ne.s32.totalorder %s101, %s102
      %p114 = scmp.eq.s32.totalorder %s29, 1
      %p115 = por %p113, %p114
      %p117 = scmp.ne.s32.totalorder %s102, %s116
      %p118 = scmp.eq.s32.totalorder %s29, 0
      %p119 = por %p117, %p118
      %s121 = sadd.s32 %s120, 1
      %p124 = scmp.eq.s32.totalorder %s23, 1
      %p125 = scmp.ne.s32.totalorder %s120, %s122
      %p126 = scmp.eq.s32.totalorder %s23, 0
      %p127 = por %p125, %p126
      %p128 = scmp.ne.s32.totalorder %s120, %s122
      %p129 = scmp.eq.s32.totalorder %s28, 1
      %p130 = por %p128, %p129
      %p131 = scmp.ne.s32.totalorder %s122, %s123
      %p132 = scmp.eq.s32.totalorder %s28, 0
      %p133 = por %p131, %p132
      %p134 = scmp.ne.s32.totalorder %s122, %s123
      %p135 = scmp.eq.s32.totalorder %s29, 1
      %p136 = por %p134, %p135
      %p138 = scmp.ne.s32.totalorder %s123, %s137
      %p139 = scmp.eq.s32.totalorder %s29, 0
      %p140 = por %p138, %p139
      %s142 = sadd.s32 %s141, 1
      %p145 = scmp.eq.s32.totalorder %s23, 1
      %p146 = scmp.ne.s32.totalorder %s141, %s143
      %p147 = scmp.eq.s32.totalorder %s23, 0
      %p148 = por %p146, %p147
      %p149 = scmp.ne.s32.totalorder %s141, %s143
      %p150 = scmp.eq.s32.totalorder %s28, 1
      %p151 = por %p149, %p150
      %p152 = scmp.ne.s32.totalorder %s143, %s144
      %p153 = scmp.eq.s32.totalorder %s28, 0
      %p154 = por %p152, %p153
      %p155 = scmp.ne.s32.totalorder %s143, %s144
      %p156 = scmp.eq.s32.totalorder %s29, 1
      %p157 = por %p155, %p156
      %p159 = scmp.ne.s32.totalorder %s144, %s158
      %p160 = scmp.eq.s32.totalorder %s29, 0
      %p161 = por %p159, %p160
      %s163 = sadd.s32 %s162, 1
      %p166 = scmp.eq.s32.totalorder %s23, 1
      %p167 = scmp.ne.s32.totalorder %s162, %s164
      %p168 = scmp.eq.s32.totalorder %s23, 0
      %p169 = por %p167, %p168
      %p170 = scmp.ne.s32.totalorder %s162, %s164
      %p171 = scmp.eq.s32.totalorder %s28, 1
      %p172 = por %p170, %p171
      %p173 = scmp.ne.s32.totalorder %s164, %s165
      %p174 = scmp.eq.s32.totalorder %s28, 0
      %p175 = por %p173, %p174
      %p176 = scmp.ne.s32.totalorder %s164, %s165
      %p177 = scmp.eq.s32.totalorder %s29, 1
      %p178 = por %p176, %p177
      %p180 = scmp.ne.s32.totalorder %s165, %s179
      %p181 = scmp.eq.s32.totalorder %s29, 0
      %p182 = por %p180, %p181
      %s184 = sadd.s32 %s183, 1
      %p187 = scmp.eq.s32.totalorder %s23, 1
      %p188 = scmp.ne.s32.totalorder %s183, %s185
      %p189 = scmp.eq.s32.totalorder %s23, 0
      %p190 = por %p188, %p189
      %p191 = scmp.ne.s32.totalorder %s183, %s185
      %p192 = scmp.eq.s32.totalorder %s28, 1
      %p193 = por %p191, %p192
      %p194 = scmp.ne.s32.totalorder %s185, %s186
      %p195 = scmp.eq.s32.totalorder %s28, 0
      %p196 = por %p194, %p195
      %p197 = scmp.ne.s32.totalorder %s185, %s186
      %p198 = scmp.eq.s32.totalorder %s29, 1
      %p199 = por %p197, %p198
      %p201 = scmp.ne.s32.totalorder %s186, %s200
      %p202 = scmp.eq.s32.totalorder %s29, 0
      %p203 = por %p201, %p202
      %s205 = sadd.s32 %s204, 1
      %p208 = scmp.eq.s32.totalorder %s23, 1
      %p209 = scmp.ne.s32.totalorder %s204, %s206
      %p210 = scmp.eq.s32.totalorder %s23, 0
      %p211 = por %p209, %p210
      %p212 = scmp.ne.s32.totalorder %s204, %s206
      %p213 = scmp.eq.s32.totalorder %s28, 1
      %p214 = por %p212, %p213
      %p215 = scmp.ne.s32.totalorder %s206, %s207
      %p216 = scmp.eq.s32.totalorder %s28, 0
      %p217 = por %p215, %p216
      %p218 = scmp.ne.s32.totalorder %s206, %s207
      %p219 = scmp.eq.s32.totalorder %s29, 1
      %p220 = por %p218, %p219
      %p222 = scmp.ne.s32.totalorder %s207, %s221
      %p223 = scmp.eq.s32.totalorder %s29, 0
      %p224 = por %p222, %p223
      %s225 = ssub.s32 %s23, %s30
      %p226 = scmp.eq.s32.totalorder %s225, 0
      %s228 = sadd.s32 %s227, 1
      %s229 = scalar_select %p226, %s227, %s228
      %p232 = pneg %p226
      %p233 = scmp.eq.s32.totalorder %s23, 1
      %p234 = por %p232, %p233
      %p235 = scmp.ne.s32.totalorder %s227, %s230
      %p236 = scmp.eq.s32.totalorder %s23, 0
      %p237 = por %p235, %p236
      %p238 = scmp.ne.s32.totalorder %s227, %s230
      %p239 = scmp.eq.s32.totalorder %s28, 1
      %p240 = por %p238, %p239
      %p241 = scmp.ne.s32.totalorder %s230, %s231
      %p242 = scmp.eq.s32.totalorder %s28, 0
      %p243 = por %p241, %p242
      %p244 = scmp.ne.s32.totalorder %s230, %s231
      %p245 = scmp.eq.s32.totalorder %s29, 1
      %p246 = por %p244, %p245
      %p248 = scmp.ne.s32.totalorder %s231, %s247
      %p249 = scmp.eq.s32.totalorder %s29, 0
      %p250 = por %p248, %p249
      %p251 = scmp.le.s32.totalorder 1, %s23
      %p252 = scmp.lt.s32.totalorder %s23, 3
      %p253 = pnand %p251, %p252
      %p254 = pneg %p253
      // Predicated region
      $region9: #{tpu_custom_call.1} parent=5 // pred_check
        _
      $region10: #{tpu_custom_call.1} parent=5 // pred_check_branch
        %256 = sbr.rel (%p253) target = $region12
      $region11: #{tpu_custom_call.1} parent=5 // pred_region
        %s257 = ssub.s32 %s23, 1
        // Predicated region
        $region13: #{tpu_custom_call.1} parent=11 // pred_check
          %p258 = pneg %p70
        $region14: #{tpu_custom_call.1} parent=11 // pred_check_branch
          %260 = sbr.rel (%p258) target = $region16
        $region15: #{tpu_custom_call.1} parent=11 // pred_region
          %s262 = ssub.s32 256, 256
          %263 = vsyncadd [#allocation6], %s262
          %s264 = sshll.u32 [#allocation5], 4
          %s265 = int_to_ptr.vmem [resolvable:$true] %s264
          %270 = dma.hbm_to_vmem [thread:$0]  %s1, 256, %s265, [#allocation6], 64, 64, 4
        $region16: #{tpu_custom_call.1} parent=11 // pred_fallthru
          _
        // Predicated region
        $region17: #{tpu_custom_call.1} parent=11 // pred_check
          %p271 = pneg %p91
        $region18: #{tpu_custom_call.1} parent=11 // pred_check_branch
          %273 = sbr.rel (%p271) target = $region20
        $region19: #{tpu_custom_call.1} parent=11 // pred_region
          %s275 = ssub.s32 256, 256
          %276 = vsyncadd [#allocation6], %s275
          %s277 = sshll.u32 [#allocation7], 4
          %s278 = int_to_ptr.vmem [resolvable:$true] %s277
          %283 = dma.hbm_to_vmem [thread:$0]  %s2, 256, %s278, [#allocation6], 64, 64, 4
        $region20: #{tpu_custom_call.1} parent=11 // pred_fallthru
          _
        // Predicated region
        $region21: #{tpu_custom_call.1} parent=11 // pred_check
          %p284 = pneg %p112
        $region22: #{tpu_custom_call.1} parent=11 // pred_check_branch
          %286 = sbr.rel (%p284) target = $region24
        $region23: #{tpu_custom_call.1} parent=11 // pred_region
          %s288 = ssub.s32 256, 256
          %289 = vsyncadd [#allocation9], %s288
          %s290 = sshll.u32 [#allocation8], 4
          %s291 = int_to_ptr.vmem [resolvable:$true] %s290
          %296 = dma.hbm_to_vmem [thread:$0]  %s3, 256, %s291, [#allocation9], 64, 64, 4
        $region24: #{tpu_custom_call.1} parent=11 // pred_fallthru
          _
        // Predicated region
        $region25: #{tpu_custom_call.1} parent=11 // pred_check
          %p297 = pneg %p133
        $region26: #{tpu_custom_call.1} parent=11 // pred_check_branch
          %299 = sbr.rel (%p297) target = $region28
        $region27: #{tpu_custom_call.1} parent=11 // pred_region
          _
        $region28: #{tpu_custom_call.1} parent=11 // pred_fallthru
          _
        // Predicated region
        $region29: #{tpu_custom_call.1} parent=11 // pred_check
          %p300 = pneg %p154
        $region30: #{tpu_custom_call.1} parent=11 // pred_check_branch
          %302 = sbr.rel (%p300) target = $region32
        $region31: #{tpu_custom_call.1} parent=11 // pred_region
          _
        $region32: #{tpu_custom_call.1} parent=11 // pred_fallthru
          _
        // Predicated region
        $region33: #{tpu_custom_call.1} parent=11 // pred_check
          %p303 = pneg %p175
        $region34: #{tpu_custom_call.1} parent=11 // pred_check_branch
          %305 = sbr.rel (%p303) target = $region36
        $region35: #{tpu_custom_call.1} parent=11 // pred_region
          _
        $region36: #{tpu_custom_call.1} parent=11 // pred_fallthru
          _
        // Predicated region
        $region37: #{tpu_custom_call.1} parent=11 // pred_check
          %p306 = pneg %p196
        $region38: #{tpu_custom_call.1} parent=11 // pred_check_branch
          %308 = sbr.rel (%p306) target = $region40
        $region39: #{tpu_custom_call.1} parent=11 // pred_region
          _
        $region40: #{tpu_custom_call.1} parent=11 // pred_fallthru
          _
        // Predicated region
        $region41: #{tpu_custom_call.1} parent=11 // pred_check
          %p309 = pneg %p217
        $region42: #{tpu_custom_call.1} parent=11 // pred_check_branch
          %311 = sbr.rel (%p309) target = $region44
        $region43: #{tpu_custom_call.1} parent=11 // pred_region
          _
        $region44: #{tpu_custom_call.1} parent=11 // pred_fallthru
          _
      $region12: #{tpu_custom_call.1} parent=5 // pred_fallthru
        _
      %p312 = scmp.lt.s32.totalorder %s23, 2
      // Predicated region
      $region45: #{tpu_custom_call.1} parent=5 // pred_check
        %p313 = pneg %p312
      $region46: #{tpu_custom_call.1} parent=5 // pred_check_branch
        %315 = sbr.rel (%p313) target = $region48
      $region47: #{tpu_custom_call.1} parent=5 // pred_region
        // Predicated region
        $region49: #{tpu_custom_call.1} parent=47 // pred_check
          %p316 = pneg %p43
        $region50: #{tpu_custom_call.1} parent=47 // pred_check_branch
          %318 = sbr.rel (%p316) target = $region52
        $region51: #{tpu_custom_call.1} parent=47 // pred_region
          %s319 = sand.u32 %s33, 1
          %s320 = scalar_lea.sflag [#allocation3], %s319
          %s321 = sand.u32 %s33, 1
          %s322 = smul.addr %s321, 4
          %s323 = scalar_lea.vmem [#allocation2], %s322
          %s325 = ssub.s32 64, 64
          %326 = vsyncadd %s320, %s325
          %s327 = smul.addr %s23, 64
          %s328 = scalar_lea.hbm %s0, %s327
          %s330 = sshll.u32 %s323, 4
          %s331 = int_to_ptr.vmem [resolvable:$true] %s330
          %333 = dma.hbm_to_vmem [thread:$0]  %s328, 64, %s331, %s320
        $region52: #{tpu_custom_call.1} parent=47 // pred_fallthru
          _
      $region48: #{tpu_custom_call.1} parent=5 // pred_fallthru
        _
      %p334 = scmp.le.s32.totalorder 1, %s23
      %p335 = scmp.lt.s32.totalorder %s23, 3
      %p336 = pnand %p334, %p335
      %p337 = pneg %p336
      // Predicated region
      $region53: #{tpu_custom_call.1} parent=5 // pred_check
        _
      $region54: #{tpu_custom_call.1} parent=5 // pred_check_branch
        %339 = sbr.rel (%p336) target = $region56
      $region55: #{tpu_custom_call.1} parent=5 // pred_region
        %s340 = ssub.s32 %s23, 1
        %s341 = sand.u32 %s36, 1
        %s342 = scalar_lea.sflag [#allocation3], %s341
        %s343 = sand.u32 %s36, 1
        %s344 = smul.addr %s343, 4
        %s345 = scalar_lea.vmem [#allocation2], %s344
        // Predicated region
        $region57: #{tpu_custom_call.1} parent=55 // pred_check
          %p346 = pneg %p49
        $region58: #{tpu_custom_call.1} parent=55 // pred_check_branch
          %348 = sbr.rel (%p346) target = $region60
        $region59: #{tpu_custom_call.1} parent=55 // pred_region
          %349 = dma.done %s342, 64
        $region60: #{tpu_custom_call.1} parent=55 // pred_fallthru
          _
        // Predicated region
        $region61: #{tpu_custom_call.1} parent=55 // pred_check
          %p350 = pneg %p70
        $region62: #{tpu_custom_call.1} parent=55 // pred_check_branch
          %352 = sbr.rel (%p350) target = $region64
        $region63: #{tpu_custom_call.1} parent=55 // pred_region
          %353 = dma.done [#allocation6], 256
        $region64: #{tpu_custom_call.1} parent=55 // pred_fallthru
          _
        // Predicated region
        $region65: #{tpu_custom_call.1} parent=55 // pred_check
          %p354 = pneg %p91
        $region66: #{tpu_custom_call.1} parent=55 // pred_check_branch
          %356 = sbr.rel (%p354) target = $region68
        $region67: #{tpu_custom_call.1} parent=55 // pred_region
          %357 = dma.done [#allocation6], 256
        $region68: #{tpu_custom_call.1} parent=55 // pred_fallthru
          _
        // Predicated region
        $region69: #{tpu_custom_call.1} parent=55 // pred_check
          %p358 = pneg %p112
        $region70: #{tpu_custom_call.1} parent=55 // pred_check_branch
          %360 = sbr.rel (%p358) target = $region72
        $region71: #{tpu_custom_call.1} parent=55 // pred_region
          %361 = dma.done [#allocation9], 256
        $region72: #{tpu_custom_call.1} parent=55 // pred_fallthru
          _
        %s362 = sand.u32 %s36, 1
        %s363 = scalar_lea.sflag [#allocation3], %s362
        %s364 = sand.u32 %s36, 1
        %s365 = smul.addr %s364, 4
        %s366 = scalar_lea.vmem [#allocation2], %s365
        %p367 = pneg %p49
        %p368 = pneg %p46
        %p369 = pneg %p70
        %p370 = pneg %p67
        %p371 = pneg %p91
        %p372 = pneg %p88
        %p373 = pneg %p112
        %p374 = pneg %p109
        %p375 = pneg %p133
        %p376 = pneg %p130
        %p377 = pneg %p154
        %p378 = pneg %p151
        %p379 = pneg %p175
        %p380 = pneg %p172
        %p381 = pneg %p196
        %p382 = pneg %p193
        %p383 = pneg %p217
        %p384 = pneg %p214
        %p385 = pneg %p243
        %p386 = pneg %p240
        %s387 = sand.u32 %s230, 1
        %s388 = scalar_lea.sflag [#allocation4], %s387
        %s389 = sand.u32 %s230, 1
        %s390 = smul.addr %s389, 4
        %s391 = scalar_lea.vmem [#allocation10], %s390
        %v393 = vld [vmem:[%s345] sm:$0xf]
        %v394 = vld [vmem:[#allocation5] sm:$0xf]
        %v395 = vld [vmem:[#allocation5 + $0x4] sm:$0xf]
        %v396 = vld [vmem:[#allocation5 + $0x8] sm:$0xf]
        %v397 = vld [vmem:[#allocation5 + $0xc] sm:$0xf]
        %v398 = vld [vmem:[%s4] sm:$0x1]
        %v400 = vlaneseq
        %v401 = vshrl.u32 %v400, 7
        %v402 = vsub.s32 0, %v401
        %v403 = vrot.slane %v398, %v402
        %v409 = vunpack.c.l.b16 %v394
        %v410 = vunpack.c.l.b16 %v395
        %v411 = vunpack.c.l.b16 %v396
        %v412 = vunpack.c.l.b16 %v397
        %v413 = vpack.c.b16 %v410, %v409
        %v414 = vpack.c.b16 %v412, %v411
        %vm417 = vcmask 261120
        %v419 = vsel %vm417, %v393, 0
        %421 = vmatprep.subr.bf16.mxu0 0
        %422 = vmatpush1.bf16.msra.mxu0 %v413
        %423 = vmatprep.subr.bf16.mxu0 0
        %424 = vmatpush1.bf16.msra.mxu0 %v414
        %425 = vmatprep.subr.bf16.mxu0 0
        %426 = vmatpush1.bf16.msra.mxu0 0
        %427 = vmatprep.subr.bf16.mxu0 0
        %428 = vmatpush1.bf16.msra.mxu0 0
        %429 = vmatprep.subr.bf16.mxu0 0
        %430 = vmatpush1.bf16.msra.mxu0 0
        %431 = vmatprep.subr.bf16.mxu0 0
        %432 = vmatpush1.bf16.msra.mxu0 0
        %433 = vmatprep.subr.bf16.mxu0 0
        %434 = vmatpush1.bf16.msra.mxu0 0
        %435 = vmatprep.subr.bf16.mxu0 0
        %436 = vmatpush1.bf16.msra.mxu0 0
        %437 = vmatprep.subr.bf16.mxu0 0
        %438 = vmatpush1.bf16.msra.mxu0 0
        %439 = vmatprep.subr.bf16.mxu0 0
        %440 = vmatpush1.bf16.msra.mxu0 0
        %441 = vmatprep.subr.bf16.mxu0 0
        %442 = vmatpush1.bf16.msra.mxu0 0
        %443 = vmatprep.subr.bf16.mxu0 0
        %444 = vmatpush1.bf16.msra.mxu0 0
        %445 = vmatprep.subr.bf16.mxu0 0
        %446 = vmatpush1.bf16.msra.mxu0 0
        %447 = vmatprep.subr.bf16.mxu0 0
        %448 = vmatpush1.bf16.msra.mxu0 0
        %449 = vmatprep.subr.bf16.mxu0 0
        %450 = vmatpush1.bf16.msra.mxu0 0
        %451 = vmatprep.subr.bf16.mxu0 0
        %452 = vmatpush1.bf16.msra.mxu0 0
        %453 = vmatprep.mubr.bf16.mxu0 0
        %454 = vmatmul.mubr.bf16.gmra.mrb[0].mxu0 %v419
        %v455 = vpop.f32.mrb[0].mxu0
        %v456 = vadd.f32 %v403, %v455
        %v457 = vpop.f32.mrb[0].mxu0
        %v458 = vpop.f32.mrb[0].mxu0
        %v459 = vpop.f32.mrb[0].mxu0
        %460 = vdwg.mxu0
        %v461 = vld [vmem:[#allocation7] sm:$0xf]
        %v462 = vld [vmem:[#allocation7 + $0x4] sm:$0xf]
        %v463 = vld [vmem:[#allocation7 + $0x8] sm:$0xf]
        %v464 = vld [vmem:[#allocation7 + $0xc] sm:$0xf]
        %v465 = vld [vmem:[%s5] sm:$0x1]
        %v467 = vlaneseq
        %v468 = vshrl.u32 %v467, 7
        %v469 = vsub.s32 0, %v468
        %v470 = vrot.slane %v465, %v469
        %v476 = vunpack.c.l.b16 %v461
        %v477 = vunpack.c.l.b16 %v462
        %v478 = vunpack.c.l.b16 %v463
        %v479 = vunpack.c.l.b16 %v464
        %v480 = vpack.c.b16 %v477, %v476
        %v481 = vpack.c.b16 %v479, %v478
        %484 = vmatprep.subr.bf16.mxu0 0
        %485 = vmatpush1.bf16.msra.mxu0 %v480
        %486 = vmatprep.subr.bf16.mxu0 0
        %487 = vmatpush1.bf16.msra.mxu0 %v481
        %488 = vmatprep.subr.bf16.mxu0 0
        %489 = vmatpush1.bf16.msra.mxu0 0
        %490 = vmatprep.subr.bf16.mxu0 0
        %491 = vmatpush1.bf16.msra.mxu0 0
        %492 = vmatprep.subr.bf16.mxu0 0
        %493 = vmatpush1.bf16.msra.mxu0 0
        %494 = vmatprep.subr.bf16.mxu0 0
        %495 = vmatpush1.bf16.msra.mxu0 0
        %496 = vmatprep.subr.bf16.mxu0 0
        %497 = vmatpush1.bf16.msra.mxu0 0
        %498 = vmatprep.subr.bf16.mxu0 0
        %499 = vmatpush1.bf16.msra.mxu0 0
        %500 = vmatprep.subr.bf16.mxu0 0
        %501 = vmatpush1.bf16.msra.mxu0 0
        %502 = vmatprep.subr.bf16.mxu0 0
        %503 = vmatpush1.bf16.msra.mxu0 0
        %504 = vmatprep.subr.bf16.mxu0 0
        %505 = vmatpush1.bf16.msra.mxu0 0
        %506 = vmatprep.subr.bf16.mxu0 0
        %507 = vmatpush1.bf16.msra.mxu0 0
        %508 = vmatprep.subr.bf16.mxu0 0
        %509 = vmatpush1.bf16.msra.mxu0 0
        %510 = vmatprep.subr.bf16.mxu0 0
        %511 = vmatpush1.bf16.msra.mxu0 0
        %512 = vmatprep.subr.bf16.mxu0 0
        %513 = vmatpush1.bf16.msra.mxu0 0
        %514 = vmatprep.subr.bf16.mxu0 0
        %515 = vmatpush1.bf16.msra.mxu0 0
        %516 = vmatprep.mubr.bf16.mxu0 0
        %517 = vmatmul.mubr.bf16.gmra.mrb[0].mxu0 %v419
        %v518 = vpop.f32.mrb[0].mxu0
        %v519 = vadd.f32 %v470, %v518
        %v520 = vpop.f32.mrb[0].mxu0
        %v521 = vpop.f32.mrb[0].mxu0
        %v522 = vpop.f32.mrb[0].mxu0
        %523 = vdwg.mxu0
        %v524 = vld [vmem:[#allocation8] sm:$0xf]
        %v525 = vld [vmem:[#allocation8 + $0x4] sm:$0xf]
        %v526 = vld [vmem:[#allocation8 + $0x8] sm:$0xf]
        %v527 = vld [vmem:[#allocation8 + $0xc] sm:$0xf]
        %v528 = vld [vmem:[%s6] sm:$0x1]
        %v530 = vlaneseq
        %v531 = vshrl.u32 %v530, 7
        %v532 = vsub.s32 0, %v531
        %v533 = vrot.slane %v528, %v532
        %v539 = vunpack.c.l.b16 %v524
        %v540 = vunpack.c.l.b16 %v525
        %v541 = vunpack.c.l.b16 %v526
        %v542 = vunpack.c.l.b16 %v527
        %v543 = vpack.c.b16 %v540, %v539
        %v544 = vpack.c.b16 %v542, %v541
        %547 = vmatprep.subr.bf16.mxu0 0
        %548 = vmatpush1.bf16.msra.mxu0 %v543
        %549 = vmatprep.subr.bf16.mxu0 0
        %550 = vmatpush1.bf16.msra.mxu0 %v544
        %551 = vmatprep.subr.bf16.mxu0 0
        %552 = vmatpush1.bf16.msra.mxu0 0
        %553 = vmatprep.subr.bf16.mxu0 0
        %554 = vmatpush1.bf16.msra.mxu0 0
        %555 = vmatprep.subr.bf16.mxu0 0
        %556 = vmatpush1.bf16.msra.mxu0 0
        %557 = vmatprep.subr.bf16.mxu0 0
        %558 = vmatpush1.bf16.msra.mxu0 0
        %559 = vmatprep.subr.bf16.mxu0 0
        %560 = vmatpush1.bf16.msra.mxu0 0
        %561 = vmatprep.subr.bf16.mxu0 0
        %562 = vmatpush1.bf16.msra.mxu0 0
        %563 = vmatprep.subr.bf16.mxu0 0
        %564 = vmatpush1.bf16.msra.mxu0 0
        %565 = vmatprep.subr.bf16.mxu0 0
        %566 = vmatpush1.bf16.msra.mxu0 0
        %567 = vmatprep.subr.bf16.mxu0 0
        %568 = vmatpush1.bf16.msra.mxu0 0
        %569 = vmatprep.subr.bf16.mxu0 0
        %570 = vmatpush1.bf16.msra.mxu0 0
        %571 = vmatprep.subr.bf16.mxu0 0
        %572 = vmatpush1.bf16.msra.mxu0 0
        %573 = vmatprep.subr.bf16.mxu0 0
        %574 = vmatpush1.bf16.msra.mxu0 0
        %575 = vmatprep.subr.bf16.mxu0 0
        %576 = vmatpush1.bf16.msra.mxu0 0
        %577 = vmatprep.subr.bf16.mxu0 0
        %578 = vmatpush1.bf16.msra.mxu0 0
        %579 = vmatprep.mubr.bf16.mxu0 0
        %580 = vmatmul.mubr.bf16.gmra.mrb[0].mxu0 %v419
        %v581 = vpop.f32.mrb[0].mxu0
        %v582 = vadd.f32 %v533, %v581
        %v583 = vpop.f32.mrb[0].mxu0
        %v584 = vpop.f32.mrb[0].mxu0
        %v585 = vpop.f32.mrb[0].mxu0
        %586 = vdwg.mxu0
        %v587 = vpack.c.bf16 %v456, %v456
        %v588 = vpack.c.bf16 %v519, %v519
        %v590 = vsel %vm417, %v587, 0
        %v593 = vsel %vm417, %v588, 0
        %595 = vmatprep.subr.bf16.mxu0 0
        %596 = vmatpush1.bf16.xpose.msra.mxu0 %v593
        %597 = vmatprep.subr.bf16.mxu0 0
        %598 = vmatpush1.bf16.xpose.msra.mxu0 0
        %599 = vmatprep.subr.bf16.mxu0 0
        %600 = vmatpush1.bf16.xpose.msra.mxu0 0
        %601 = vmatprep.subr.bf16.mxu0 0
        %602 = vmatpush1.bf16.xpose.msra.mxu0 0
        %603 = vmatprep.subr.bf16.mxu0 0
        %604 = vmatpush1.bf16.xpose.msra.mxu0 0
        %605 = vmatprep.subr.bf16.mxu0 0
        %606 = vmatpush1.bf16.xpose.msra.mxu0 0
        %607 = vmatprep.subr.bf16.mxu0 0
        %608 = vmatpush1.bf16.xpose.msra.mxu0 0
        %609 = vmatprep.subr.bf16.mxu0 0
        %610 = vmatpush1.bf16.xpose.msra.mxu0 0
        %611 = vmatprep.subr.bf16.mxu0 0
        %612 = vmatpush1.bf16.xpose.msra.mxu0 0
        %613 = vmatprep.subr.bf16.mxu0 0
        %614 = vmatpush1.bf16.xpose.msra.mxu0 0
        %615 = vmatprep.subr.bf16.mxu0 0
        %616 = vmatpush1.bf16.xpose.msra.mxu0 0
        %617 = vmatprep.subr.bf16.mxu0 0
        %618 = vmatpush1.bf16.xpose.msra.mxu0 0
        %619 = vmatprep.subr.bf16.mxu0 0
        %620 = vmatpush1.bf16.xpose.msra.mxu0 0
        %621 = vmatprep.subr.bf16.mxu0 0
        %622 = vmatpush1.bf16.xpose.msra.mxu0 0
        %623 = vmatprep.subr.bf16.mxu0 0
        %624 = vmatpush1.bf16.xpose.msra.mxu0 0
        %625 = vmatprep.subr.bf16.mxu0 0
        %626 = vmatpush1.bf16.xpose.msra.mxu0 0
        %627 = vmatprep.mubr.bf16.mxu0 0
        %628 = vmatmul.mubr.bf16.gmra.mrb[0].mxu0 %v590
        %v629 = vpop.f32.mrb[0].mxu0
        %v630 = vadd.f32 0.0, %v629
        %v631 = vpop.f32.mrb[0].mxu0
        %v632 = vpop.f32.mrb[0].mxu0
        %v633 = vpop.f32.mrb[0].mxu0
        %634 = vdwg.mxu0
        %vm635 = vcmask 64512
        %v636 = vsel %vm635, %v630, -inf
        %637 = vmax.xlane.f32.xlu0 %v636
        %v638 = vpop.xlane.xlu0 %637
        %v639 = vsub.f32 %v630, %v638
        %v640 = vmul.f32 %v639, 1.442695
        %v641 = vpow.pop %v640
        %v642 = vsel %vm635, %v641, 0.0
        %643 = vadd.xlane.f32.xlu0 %v642
        %v644 = vpop.xlane.xlu0 %643
        %v645 = vpack.c.bf16 %v641, %v641
        %v646 = vpack.c.bf16 %v582, %v582
        %v648 = vsel %vm635, %v645, 0
        %vm650 = vcmask 1043456
        %v652 = vsel %vm650, %v646, 0
        %654 = vmatprep.subr.bf16.mxu0 0
        %655 = vmatpush1.bf16.msra.mxu0 %v652
        %656 = vmatprep.subr.bf16.mxu0 0
        %657 = vmatpush1.bf16.msra.mxu0 0
        %658 = vmatprep.subr.bf16.mxu0 0
        %659 = vmatpush1.bf16.msra.mxu0 0
        %660 = vmatprep.subr.bf16.mxu0 0
        %661 = vmatpush1.bf16.msra.mxu0 0
        %662 = vmatprep.subr.bf16.mxu0 0
        %663 = vmatpush1.bf16.msra.mxu0 0
        %664 = vmatprep.subr.bf16.mxu0 0
        %665 = vmatpush1.bf16.msra.mxu0 0
        %666 = vmatprep.subr.bf16.mxu0 0
        %667 = vmatpush1.bf16.msra.mxu0 0
        %668 = vmatprep.subr.bf16.mxu0 0
        %669 = vmatpush1.bf16.msra.mxu0 0
        %670 = vmatprep.subr.bf16.mxu0 0
        %671 = vmatpush1.bf16.msra.mxu0 0
        %672 = vmatprep.subr.bf16.mxu0 0
        %673 = vmatpush1.bf16.msra.mxu0 0
        %674 = vmatprep.subr.bf16.mxu0 0
        %675 = vmatpush1.bf16.msra.mxu0 0
        %676 = vmatprep.subr.bf16.mxu0 0
        %677 = vmatpush1.bf16.msra.mxu0 0
        %678 = vmatprep.subr.bf16.mxu0 0
        %679 = vmatpush1.bf16.msra.mxu0 0
        %680 = vmatprep.subr.bf16.mxu0 0
        %681 = vmatpush1.bf16.msra.mxu0 0
        %682 = vmatprep.subr.bf16.mxu0 0
        %683 = vmatpush1.bf16.msra.mxu0 0
        %684 = vmatprep.subr.bf16.mxu0 0
        %685 = vmatpush1.bf16.msra.mxu0 0
        %686 = vmatprep.mubr.bf16.mxu0 0
        %687 = vmatmul.mubr.bf16.gmra.mrb[0].mxu0 %v648
        %v688 = vpop.f32.mrb[0].mxu0
        %v689 = vadd.f32 0.0, %v688
        %v690 = vpop.f32.mrb[0].mxu0
        %v691 = vpop.f32.mrb[0].mxu0
        %v692 = vpop.f32.mrb[0].mxu0
        %693 = vdwg.mxu0
        %v694 = vrcp.pop %v644
        %v695 = vmul.f32 %v689, %v694
        %v696 = vpack.c.bf16 %v695, %v695
        %v697 = vld [vmem:[%s7] sm:$0xf]
        %v698 = vld [vmem:[%s7 + $0x4] sm:$0xf]
        %v699 = vld [vmem:[%s7 + $0x8] sm:$0xf]
        %v700 = vld [vmem:[%s7 + $0xc] sm:$0xf]
        %v701 = vld [vmem:[%s8] sm:$0x1]
        %v703 = vlaneseq
        %v704 = vshrl.u32 %v703, 7
        %v705 = vsub.s32 0, %v704
        %v706 = vrot.slane %v701, %v705
        %v712 = vunpack.c.l.b16 %v697
        %v713 = vunpack.c.l.b16 %v698
        %v714 = vunpack.c.l.b16 %v699
        %v715 = vunpack.c.l.b16 %v700
        %v716 = vpack.c.b16 %v713, %v712
        %v717 = vpack.c.b16 %v715, %v714
        %v721 = vsel %vm417, %v696, 0
        %723 = vmatprep.subr.bf16.mxu0 0
        %724 = vmatpush1.bf16.msra.mxu0 %v716
        %725 = vmatprep.subr.bf16.mxu0 0
        %726 = vmatpush1.bf16.msra.mxu0 %v717
        %727 = vmatprep.subr.bf16.mxu0 0
        %728 = vmatpush1.bf16.msra.mxu0 0
        %729 = vmatprep.subr.bf16.mxu0 0
        %730 = vmatpush1.bf16.msra.mxu0 0
        %731 = vmatprep.subr.bf16.mxu0 0
        %732 = vmatpush1.bf16.msra.mxu0 0
        %733 = vmatprep.subr.bf16.mxu0 0
        %734 = vmatpush1.bf16.msra.mxu0 0
        %735 = vmatprep.subr.bf16.mxu0 0
        %736 = vmatpush1.bf16.msra.mxu0 0
        %737 = vmatprep.subr.bf16.mxu0 0
        %738 = vmatpush1.bf16.msra.mxu0 0
        %739 = vmatprep.subr.bf16.mxu0 0
        %740 = vmatpush1.bf16.msra.mxu0 0
        %741 = vmatprep.subr.bf16.mxu0 0
        %742 = vmatpush1.bf16.msra.mxu0 0
        %743 = vmatprep.subr.bf16.mxu0 0
        %744 = vmatpush1.bf16.msra.mxu0 0
        %745 = vmatprep.subr.bf16.mxu0 0
        %746 = vmatpush1.bf16.msra.mxu0 0
        %747 = vmatprep.subr.bf16.mxu0 0
        %748 = vmatpush1.bf16.msra.mxu0 0
        %749 = vmatprep.subr.bf16.mxu0 0
        %750 = vmatpush1.bf16.msra.mxu0 0
        %751 = vmatprep.subr.bf16.mxu0 0
        %752 = vmatpush1.bf16.msra.mxu0 0
        %753 = vmatprep.subr.bf16.mxu0 0
        %754 = vmatpush1.bf16.msra.mxu0 0
        %755 = vmatprep.mubr.bf16.mxu0 0
        %756 = vmatmul.mubr.bf16.gmra.mrb[0].mxu0 %v721
        %v757 = vpop.f32.mrb[0].mxu0
        %v758 = vadd.f32 %v706, %v757
        %v759 = vpop.f32.mrb[0].mxu0
        %v760 = vpop.f32.mrb[0].mxu0
        %v761 = vpop.f32.mrb[0].mxu0
        %762 = vdwg.mxu0
        %v763 = vpack.c.bf16 %v758, %v758
        %vm764 = vcmask 257024
        %765 = vst.msk [vmem:[%s391] sm:$0xf] %vm764, %v763
        %s766 = sand.u32 %s230, 1
        %s767 = scalar_lea.sflag [#allocation4], %s766
        %s768 = sand.u32 %s230, 1
        %s769 = smul.addr %s768, 4
        %s770 = scalar_lea.vmem [#allocation10], %s769
        // Predicated region
        $region73: #{tpu_custom_call.1} parent=55 // pred_check
          %p771 = pneg %p240
        $region74: #{tpu_custom_call.1} parent=55 // pred_check_branch
          %773 = sbr.rel (%p771) target = $region76
        $region75: #{tpu_custom_call.1} parent=55 // pred_region
          %s775 = ssub.s32 64, 64
          %776 = vsyncadd %s767, %s775
          %s777 = smul.addr %s28, 64
          %s778 = scalar_lea.hbm %s9, %s777
          %s780 = sshll.u32 %s770, 4
          %s781 = int_to_ptr.vmem [resolvable:$true] %s780
          %783 = dma.vmem_to_hbm [thread:$0]  %s781, 64, %s778, %s767
        $region76: #{tpu_custom_call.1} parent=55 // pred_fallthru
          _
      $region56: #{tpu_custom_call.1} parent=5 // pred_fallthru
        _
      %p784 = scmp.le.s32.totalorder 2, %s23
      // Predicated region
      $region77: #{tpu_custom_call.1} parent=5 // pred_check
        %p785 = pneg %p784
      $region78: #{tpu_custom_call.1} parent=5 // pred_check_branch
        %787 = sbr.rel (%p785) target = $region80
      $region79: #{tpu_custom_call.1} parent=5 // pred_region
        %s788 = ssub.s32 %s23, 2
        // Predicated region
        $region81: #{tpu_custom_call.1} parent=79 // pred_check
          %p789 = pneg %p246
        $region82: #{tpu_custom_call.1} parent=79 // pred_check_branch
          %791 = sbr.rel (%p789) target = $region84
        $region83: #{tpu_custom_call.1} parent=79 // pred_region
          %s792 = sand.u32 %s231, 1
          %s793 = scalar_lea.sflag [#allocation4], %s792
          %s794 = sand.u32 %s231, 1
          %s795 = smul.addr %s794, 4
          %s796 = scalar_lea.vmem [#allocation10], %s795
          %797 = dma.done %s793, 64
        $region84: #{tpu_custom_call.1} parent=79 // pred_fallthru
          _
      $region80: #{tpu_custom_call.1} parent=5 // pred_fallthru
        _
    $region6: #{tpu_custom_call.1} parent=1 // loop_footer
      %s27 = sadd.s32 1, %s23
    $region7: #{tpu_custom_call.1} parent=1 // loop_footer_branch
      %22 = sbr.rel target = $region3
    $region8: #{tpu_custom_call.1} parent=1 // loop_exit
      _
    %798 = vsyncpa [#allocation3], 1
    %s799 = scalar_lea.sflag [#allocation3], 1
    %800 = vsyncpa %s799, 1
    %801 = vsyncpa [#allocation6], 1
    %802 = vsyncpa [#allocation9], 1
    %803 = vsyncpa [#allocation4], 1
    %s804 = scalar_lea.sflag [#allocation4], 1
    %805 = vsyncpa %s804, 1

</llo_original>
